<compile_context>
chip_gen: v5e
topology: v5e:2x2
jax: 0.10.0
libtpu: 0.0.40
codegen_flags: <defaults>
</compile_context>

<pallas_src>
import math

import jax
import jax.numpy as jnp
from jax.experimental import pallas as pl
from jax.experimental.pallas import tpu as pltpu

_LANES = 128          # vreg lane width: lane-dense output -> full-width vst, no vst.msk
_MAX_TILE_ROWS = 4096  # (4096,128) f32 = 2 MiB/tile; in+out double-buffered ~8 MiB VMEM


def _sceneflow_copy_kernel(src_ref, dst_ref):
    # forward(): return self.scene_flow  ->  identity copy of the current tile.
    # Pure vld/vst; no casts, masks, or VALU work.
    dst_ref[...] = src_ref[...]


def _pick_tile_rows(n_rows: int) -> int:
    """Largest sublane-aligned tile that still leaves >= 2 grid blocks."""
    if n_rows <= 8:
        # Full-extent single block (allowed: block dim == full array dim).
        return n_rows
    half = max(8, ((n_rows // 2) // 8) * 8)   # >=2 blocks, multiple of 8 sublanes
    return min(_MAX_TILE_ROWS, half)


def _lane_dense_copy(slab: jax.Array) -> jax.Array:
    n_rows, lanes = slab.shape
    tile_rows = _pick_tile_rows(n_rows)
    grid = (pl.cdiv(n_rows, tile_rows),)       # partial last block masked by Pallas
    itemsize = jnp.dtype(slab.dtype).itemsize
    return pl.pallas_call(
        _sceneflow_copy_kernel,
        out_shape=jax.ShapeDtypeStruct((n_rows, lanes), slab.dtype),
        grid=grid,
        in_specs=[pl.BlockSpec((tile_rows, lanes), lambda i: (i, 0))],
        out_specs=pl.BlockSpec((tile_rows, lanes), lambda i: (i, 0)),
        cost_estimate=pl.CostEstimate(
            flops=0,
            transcendentals=0,
            bytes_accessed=2 * n_rows * lanes * itemsize,
        ),
        compiler_params=pltpu.CompilerParams(
            # Row-tile axis is independent -> shard across both TCs on v7x.
            dimension_semantics=("parallel",),
        ),
    )(slab)


@jax.jit
def scene_flow_forward(scene_flow: jax.Array) -> jax.Array:
    """Pallas equivalent of SceneFlow.forward(): returns the parameter tensor.

    The parameter is viewed as a lane-dense (rows, 128) slab and copied with a
    tiled, pipelined identity kernel.  When the element count is a multiple of
    128 (the usual case) there is NO pad and NO trailing slice — the reshapes
    are free bitcasts; otherwise a minimal pad-to-128 fallback is used.
    """
    orig_shape = scene_flow.shape
    total = math.prod(orig_shape)
    flat = scene_flow.reshape(-1)

    if total % _LANES == 0:
        # Fast path: free reshape to a lane-dense slab, no pad, no slice.
        slab = flat.reshape(total // _LANES, _LANES)
        out = _lane_dense_copy(slab)
        return out.reshape(orig_shape)

    # Fallback: pad only up to the next multiple of 128 (rows are NOT padded to
    # a tile multiple — Pallas masks the partial last block).
    n_rows = -(-total // _LANES)
    padded_total = n_rows * _LANES
    slab = jnp.pad(flat, (0, padded_total - total)).reshape(n_rows, _LANES)
    out = _lane_dense_copy(slab)
    return out.reshape(-1)[:total].reshape(orig_shape)


def init_scene_flow_param(coord: jax.Array) -> jax.Array:
    """Mirrors nn.Parameter(torch.zeros(coord.shape)) with coord's dtype."""
    return jnp.zeros(coord.shape, dtype=coord.dtype)


if __name__ == "__main__":
    key = jax.random.PRNGKey(0)
    # `coord` only supplies the shape/dtype of the parameter (a small point cloud).
    coord = jax.random.normal(key, (1024, 3), dtype=jnp.float32)

    # forward() on the freshly initialized (zero) parameter.
    scene_flow_param = init_scene_flow_param(coord)
    out = jax.block_until_ready(scene_flow_forward(scene_flow_param))
    assert out.shape == coord.shape
    assert out.dtype == coord.dtype
    assert bool(jnp.all(out == 0.0))

    # Also exercise the copy path with non-trivial values (as after optimizer
    # steps): the kernel must return the parameter exactly (identity semantics).
    trained_param = jax.random.normal(jax.random.PRNGKey(1), coord.shape, dtype=jnp.float32)
    out2 = jax.block_until_ready(scene_flow_forward(trained_param))
    assert bool(jnp.array_equal(out2, trained_param))

    # Exercise the non-multiple-of-128 fallback path once for coverage.
    odd_param = jax.random.normal(jax.random.PRNGKey(2), (37, 3), dtype=jnp.float32)
    out3 = jax.block_until_ready(scene_flow_forward(odd_param))
    assert bool(jnp.array_equal(out3, odd_param))

    print("KERNEL_OK")
</pallas_src>

<mosaic_0001>
module attributes {stable_mosaic.version = 11 : i64} {
  func.func @_sceneflow_copy_kernel(%arg0: i32, %arg1: memref<8x128xf32, #tpu.memory_space<vmem>>, %arg2: memref<8x128xf32, #tpu.memory_space<vmem>>) attributes {dimension_semantics = [#tpu.dimension_semantics<parallel>], iteration_bounds = array<i64: 3>, scalar_prefetch = 0 : i64, scratch_operands = 0 : i64, tpu.core_type = #tpu.core_type<tc>, window_params = [{transform_indices = @transform_0, window_bounds = array<i64: 8, 128>}, {transform_indices = @transform_1, window_bounds = array<i64: 8, 128>}]} {
    %c0 = arith.constant 0 : index
    %c0_0 = arith.constant 0 : index
    %0 = vector.load %arg1[%c0, %c0_0] : memref<8x128xf32, #tpu.memory_space<vmem>>, vector<8x128xf32>
    %c0_1 = arith.constant 0 : index
    %c0_2 = arith.constant 0 : index
    %1 = vector.load %arg2[%c0_1, %c0_2] : memref<8x128xf32, #tpu.memory_space<vmem>>, vector<8x128xf32>
    tpu.vector_store %arg2[%c0_1, %c0_2], %0 {strides = array<i32>} : memref<8x128xf32, #tpu.memory_space<vmem>>, vector<8x128xf32>,
    return
  }
  func.func @transform_0(%arg0: i32) -> (i32, i32) {
    %c0_i32 = arith.constant 0 : i32
    %c0_i32_0 = arith.constant 0 : i32
    return %arg0, %c0_i32 : i32, i32
  }
  func.func @transform_1(%arg0: i32) -> (i32, i32) {
    %c0_i32 = arith.constant 0 : i32
    %c0_i32_0 = arith.constant 0 : i32
    return %arg0, %c0_i32 : i32, i32
  }
}

</mosaic_0001>

<llo_original>
// kernel: scene_flow_forward.1
$region0: #{scene_flow_forward.1}
  #allocation0 [shape = 'u32[]', space=smem, size = 0x4, offset = 0x4, fixed_abs, tag = 'smem constant byte address 0x4 - core index']
  #allocation1 [shape = 'u32[72,128]{1,0:T(1,128)}', space=vmem, size = 0x9000, scoped, tag = 'internal scratch']
  %s0 = inlined_call_operand.vmem [shape: f32[24,128], index: 0, kind: input, shape index: {}]
  %s1 = inlined_call_operand.vmem [shape: f32[24,128], index: 1, kind: output, shape index: {}]
  %s2 = sld [smem:[#allocation0]]
  $region37: #{scene_flow_forward.1} parent=0
    _
  %s4 = ssub.s32 1, %s2
  %s5 = scalar_select 0, %s4, %s2
  loop: start=0, step=1, limit=5
  $region2: #{scene_flow_forward.1} parent=0 // loop_pre_header
    _
  $region3: #{scene_flow_forward.1} parent=0 // loop_header
    %s7 = sphi 0, %s11
    %p8 = scmp.ge.s32.totalorder %s7, 5
    %s17 = sphi 0, %s19
    %s20 = sphi 0, %s17
    %s21 = sphi 0, %s20
    %s37 = sphi 0, %s21
    %s43 = sphi 0, %s45
    %s46 = sphi 0, %s43
    %s47 = sphi 0, %s46
    %s63 = sphi 0, %s47
  $region4: #{scene_flow_forward.1} parent=0 // loop_header_branch
    %10 = sbr.rel (%p8) target = $region8
  $region5: #{scene_flow_forward.1} parent=0 // loop_body
    %s12 = ssub.s32 %s7, 1
    %s13 = ssub.s32 %s7, 2
    %s14 = sadd.s32 %s7, 1
    %s15 = ssub.s32 %s7, %s14
    %p16 = scmp.eq.s32.totalorder %s15, 0
    %s18 = sadd.s32 %s17, 1
    %s19 = scalar_select %p16, %s17, %s18
    %p22 = pneg %p16
    %p23 = scmp.eq.s32.totalorder %s7, 2
    %p24 = por %p22, %p23
    %p25 = scmp.ne.s32.totalorder %s17, %s20
    %p26 = scmp.eq.s32.totalorder %s7, 0
    %p27 = por %p25, %p26
    %p28 = scmp.ne.s32.totalorder %s17, %s20
    %p29 = scmp.eq.s32.totalorder %s12, 2
    %p30 = por %p28, %p29
    %p31 = scmp.ne.s32.totalorder %s20, %s21
    %p32 = scmp.eq.s32.totalorder %s12, 0
    %p33 = por %p31, %p32
    %p34 = scmp.ne.s32.totalorder %s20, %s21
    %p35 = scmp.eq.s32.totalorder %s13, 2
    %p36 = por %p34, %p35
    %p38 = scmp.ne.s32.totalorder %s21, %s37
    %p39 = scmp.eq.s32.totalorder %s13, 0
    %p40 = por %p38, %p39
    %s41 = ssub.s32 %s7, %s14
    %p42 = scmp.eq.s32.totalorder %s41, 0
    %s44 = sadd.s32 %s43, 1
    %s45 = scalar_select %p42, %s43, %s44
    %p48 = pneg %p42
    %p49 = scmp.eq.s32.totalorder %s7, 2
    %p50 = por %p48, %p49
    %p51 = scmp.ne.s32.totalorder %s43, %s46
    %p52 = scmp.eq.s32.totalorder %s7, 0
    %p53 = por %p51, %p52
    %p54 = scmp.ne.s32.totalorder %s43, %s46
    %p55 = scmp.eq.s32.totalorder %s12, 2
    %p56 = por %p54, %p55
    %p57 = scmp.ne.s32.totalorder %s46, %s47
    %p58 = scmp.eq.s32.totalorder %s12, 0
    %p59 = por %p57, %p58
    %p60 = scmp.ne.s32.totalorder %s46, %s47
    %p61 = scmp.eq.s32.totalorder %s13, 2
    %p62 = por %p60, %p61
    %p64 = scmp.ne.s32.totalorder %s47, %s63
    %p65 = scmp.eq.s32.totalorder %s13, 0
    %p66 = por %p64, %p65
    %p67 = scmp.le.s32.totalorder 1, %s7
    %p68 = scmp.lt.s32.totalorder %s7, 4
    %p69 = pnand %p67, %p68
    %p70 = pneg %p69
    // Predicated region
    $region9: #{scene_flow_forward.1} parent=5 // pred_check
      _
    $region10: #{scene_flow_forward.1} parent=5 // pred_check_branch
      %72 = sbr.rel (%p69) target = $region12
    $region11: #{scene_flow_forward.1} parent=5 // pred_region
      %s73 = ssub.s32 %s7, 1
    $region12: #{scene_flow_forward.1} parent=5 // pred_fallthru
      _
    %p74 = scmp.lt.s32.totalorder %s7, 3
    // Predicated region
    $region13: #{scene_flow_forward.1} parent=5 // pred_check
      %p75 = pneg %p74
    $region14: #{scene_flow_forward.1} parent=5 // pred_check_branch
      %77 = sbr.rel (%p75) target = $region16
    $region15: #{scene_flow_forward.1} parent=5 // pred_region
      // Predicated region
      $region17: #{scene_flow_forward.1} parent=15 // pred_check
        %p78 = pneg %p27
      $region18: #{scene_flow_forward.1} parent=15 // pred_check_branch
        %80 = sbr.rel (%p78) target = $region20
      $region19: #{scene_flow_forward.1} parent=15 // pred_region
        %p81 = scmp.lt.s32.totalorder %s7, 2
        %s82 = scalar_select %p81, %s7, 2
        %s83 = smul.addr %s82, 8
        %s84 = scalar_lea.vmem %s0, %s83
      $region20: #{scene_flow_forward.1} parent=15 // pred_fallthru
        _
    $region16: #{scene_flow_forward.1} parent=5 // pred_fallthru
      _
    %p85 = scmp.le.s32.totalorder 1, %s7
    %p86 = scmp.lt.s32.totalorder %s7, 4
    %p87 = pnand %p85, %p86
    %p88 = pneg %p87
    // Predicated region
    $region21: #{scene_flow_forward.1} parent=5 // pred_check
      _
    $region22: #{scene_flow_forward.1} parent=5 // pred_check_branch
      %90 = sbr.rel (%p87) target = $region24
    $region23: #{scene_flow_forward.1} parent=5 // pred_region
      %s91 = ssub.s32 %s7, 1
      %p92 = scmp.lt.s32.totalorder %s12, 2
      %s93 = scalar_select %p92, %s12, 2
      %s94 = smul.addr %s93, 8
      %s95 = scalar_lea.vmem %s0, %s94
      %p96 = pneg %p33
      %p97 = pneg %p30
      %p98 = pneg %p59
      %p99 = pneg %p56
      %p100 = scmp.lt.s32.totalorder %s12, 2
      %s101 = scalar_select %p100, %s12, 2
      %s102 = smul.addr %s101, 8
      %s103 = scalar_lea.vmem %s1, %s102
      %p104 = scmp.lt.s32.totalorder %s12, 2
      %s105 = scalar_select %p104, %s12, 2
      %s106 = smul.addr %s105, 8
      %s107 = scalar_lea.vmem %s0, %s106
      %p108 = scmp.lt.s32.totalorder %s12, 2
      %s109 = scalar_select %p108, %s12, 2
      %s110 = smul.addr %s109, 8
      %s111 = scalar_lea.vmem %s1, %s110
      %v112 = vld [vmem:[%s107] sm:$0xff]
      %113 = vst [vmem:[%s111] sm:$0xff] %v112
      %p114 = scmp.lt.s32.totalorder %s12, 2
      %s115 = scalar_select %p114, %s12, 2
      %s116 = smul.addr %s115, 8
      %s117 = scalar_lea.vmem %s1, %s116
      // Predicated region
      $region25: #{scene_flow_forward.1} parent=23 // pred_check
        %p118 = pneg %p56
      $region26: #{scene_flow_forward.1} parent=23 // pred_check_branch
        %120 = sbr.rel (%p118) target = $region28
      $region27: #{scene_flow_forward.1} parent=23 // pred_region
        _
      $region28: #{scene_flow_forward.1} parent=23 // pred_fallthru
        _
    $region24: #{scene_flow_forward.1} parent=5 // pred_fallthru
      _
    %p121 = scmp.le.s32.totalorder 2, %s7
    // Predicated region
    $region29: #{scene_flow_forward.1} parent=5 // pred_check
      %p122 = pneg %p121
    $region30: #{scene_flow_forward.1} parent=5 // pred_check_branch
      %124 = sbr.rel (%p122) target = $region32
    $region31: #{scene_flow_forward.1} parent=5 // pred_region
      %s125 = ssub.s32 %s7, 2
      // Predicated region
      $region33: #{scene_flow_forward.1} parent=31 // pred_check
        %p126 = pneg %p62
      $region34: #{scene_flow_forward.1} parent=31 // pred_check_branch
        %128 = sbr.rel (%p126) target = $region36
      $region35: #{scene_flow_forward.1} parent=31 // pred_region
        %p129 = scmp.lt.s32.totalorder %s13, 2
        %s130 = scalar_select %p129, %s13, 2
        %s131 = smul.addr %s130, 8
        %s132 = scalar_lea.vmem %s1, %s131
      $region36: #{scene_flow_forward.1} parent=31 // pred_fallthru
        _
    $region32: #{scene_flow_forward.1} parent=5 // pred_fallthru
      _
  $region6: #{scene_flow_forward.1} parent=0 // loop_footer
    %s11 = sadd.s32 1, %s7
  $region7: #{scene_flow_forward.1} parent=0 // loop_footer_branch
    %6 = sbr.rel target = $region3
  $region8: #{scene_flow_forward.1} parent=0 // loop_exit
    _

</llo_original>
